<compile_context>
chip_gen: v5e
topology: v5e:2x2
jax: 0.10.0
libtpu: 0.0.40
codegen_flags: <defaults>
</compile_context>

<pallas_src>
import jax
import jax.numpy as jnp
from jax.experimental import pallas as pl
from jax.experimental.pallas import tpu as pltpu

HID = 100
IN = 1
OUT = 1

LANE = 128        # lane width; batch tiles are multiples of this
MAX_TILE = 4096   # cap per-step tile (VMEM use stays ~tens of KiB)


def _affine_kernel(coef_ref, x_ref, o_ref):
    """y = a * x + c on one lane-dense (1, TN) batch tile (pure VPU fma)."""
    a = coef_ref[0]                      # scalar from SMEM
    c = coef_ref[1]
    o_ref[...] = x_ref[...] * a + c


def _tile_cols(n):
    """Batch tile width.

    * n <= 256: one full-array block (block dim == array dim is always legal).
    * larger n: lane-aligned tile ~ n/2 (>= 2 parallel grid steps so both
      TensorCores are fed on v7x), capped at MAX_TILE.
    """
    if n <= 2 * LANE:
        return n
    half = (n + 1) // 2
    t = ((half + LANE - 1) // LANE) * LANE
    return min(t, MAX_TILE)


@jax.jit
def absolute_forward(x, params):
    """x: (N, 1) float32 -> (N, 1) float32, matching Absolute.forward."""
    w1, b1, w2, b2, w3, b3 = params
    n = x.shape[0]

    # Identity activations => affine collapse. Scalars computed once per call
    # at full f32 accuracy (tiny parameter-only work in the wrapper).
    hp = jax.lax.Precision.HIGHEST
    a = jnp.dot(w3, jnp.dot(w2, w1, precision=hp), precision=hp)[0, 0]
    c = (jnp.dot(w3, jnp.dot(w2, b1, precision=hp) + b2, precision=hp) + b3)[0]
    coeffs = jnp.stack([a, c]).astype(jnp.float32)          # (2,) -> SMEM

    # Lane-dense batch layout with NO pad/copy: (N, 1) -> (1, N) is free.
    x_row = x.reshape(1, n)

    tn = _tile_cols(n)
    grid = (pl.cdiv(n, tn),)

    y_row = pl.pallas_call(
        _affine_kernel,
        out_shape=jax.ShapeDtypeStruct((1, n), jnp.float32),
        grid=grid,
        in_specs=[
            pl.BlockSpec(memory_space=pltpu.MemorySpace.SMEM),  # [a, c]
            pl.BlockSpec((1, tn), lambda i: (0, i)),            # x tile
        ],
        out_specs=pl.BlockSpec((1, tn), lambda i: (0, i)),      # lane-dense y
        compiler_params=pltpu.CompilerParams(
            dimension_semantics=("parallel",)),
    )(coeffs, x_row)

    return y_row.reshape(n, 1)


def init_params(key):
    """Deterministic init matching the layer shapes of Absolute.__init__."""
    k1, k2, k3, k4, k5, k6 = jax.random.split(key, 6)

    # PyTorch default init: U(-1/sqrt(fan_in), 1/sqrt(fan_in))
    def u(k, shape, fan_in):
        bound = 1.0 / jnp.sqrt(fan_in)
        return jax.random.uniform(k, shape, jnp.float32, -bound, bound)

    w1 = u(k1, (HID, IN), IN)       # (out, in) like nn.Linear.weight
    b1 = u(k2, (HID,), IN)
    w2 = u(k3, (HID, HID), HID)
    b2 = u(k4, (HID,), HID)
    w3 = u(k5, (OUT, HID), HID)
    b3 = u(k6, (OUT,), HID)
    return (w1, b1, w2, b2, w3, b3)


def reference_forward(x, params):
    """Pure-JAX layer-by-layer reference: lin3(lin2(lin1(x)))."""
    w1, b1, w2, b2, w3, b3 = params
    hp = jax.lax.Precision.HIGHEST
    h = jnp.dot(x, w1.T, precision=hp) + b1      # Linear(1, 100)
    h = jnp.dot(h, w2.T, precision=hp) + b2      # Linear(100, 100)
    y = jnp.dot(h, w3.T, precision=hp) + b3      # Linear(100, 1)
    return y


if __name__ == "__main__":
    key = jax.random.PRNGKey(0)
    pkey, xkey = jax.random.split(key)
    params = init_params(pkey)

    # Batch of scalar collocation points in [0, 2*pi).  N is not a multiple
    # of the tile (exercises the ragged last block) and yields a 2-step
    # parallel grid.
    N = 1000
    x = jax.random.uniform(xkey, (N, 1), jnp.float32) * 2.0 * jnp.pi

    y = absolute_forward(x, params)
    jax.block_until_ready(y)

    y_ref = reference_forward(x, params)
    assert y.shape == (N, 1)
    max_err = float(jnp.max(jnp.abs(y - y_ref)))
    assert jnp.allclose(y, y_ref, atol=1e-4, rtol=1e-4), max_err

    # TODO(synk): get_loss (autograd-based PDE residual) is a training-time
    # routine; in JAX it would be jax.grad around `absolute_forward`, not
    # part of the forward kernel.
    print("KERNEL_OK")
</pallas_src>

<mosaic_0001>
module attributes {stable_mosaic.version = 11 : i64} {
  func.func @_affine_kernel(%arg0: i32, %arg1: memref<2xf32, #tpu.memory_space<smem>>, %arg2: memref<1x512xf32, #tpu.memory_space<vmem>>, %arg3: memref<1x512xf32, #tpu.memory_space<vmem>>) attributes {dimension_semantics = [#tpu.dimension_semantics<parallel>], iteration_bounds = array<i64: 2>, scalar_prefetch = 0 : i64, scratch_operands = 0 : i64, tpu.core_type = #tpu.core_type<tc>, window_params = [{transform_indices = @transform_0, window_bounds = array<i64: 2>}, {transform_indices = @transform_1, window_bounds = array<i64: 1, 512>}, {transform_indices = @transform_2, window_bounds = array<i64: 1, 512>}]} {
    %c0 = arith.constant 0 : index
    %0 = memref.load %arg1[%c0] : memref<2xf32, #tpu.memory_space<smem>>
    %c1 = arith.constant 1 : index
    %1 = memref.load %arg1[%c1] : memref<2xf32, #tpu.memory_space<smem>>
    %c0_0 = arith.constant 0 : index
    %c0_1 = arith.constant 0 : index
    %2 = vector.load %arg2[%c0_0, %c0_1] : memref<1x512xf32, #tpu.memory_space<vmem>>, vector<1x512xf32>
    %3 = vector.broadcast %0 : f32 to vector<1x512xf32>
    %4 = arith.mulf %2, %3 : vector<1x512xf32>
    %5 = vector.broadcast %1 : f32 to vector<1x512xf32>
    %6 = arith.addf %4, %5 : vector<1x512xf32>
    %c0_2 = arith.constant 0 : index
    %c0_3 = arith.constant 0 : index
    %7 = vector.load %arg3[%c0_2, %c0_3] : memref<1x512xf32, #tpu.memory_space<vmem>>, vector<1x512xf32>
    tpu.vector_store %arg3[%c0_2, %c0_3], %6 {strides = array<i32>} : memref<1x512xf32, #tpu.memory_space<vmem>>, vector<1x512xf32>,
    return
  }
  func.func @transform_0(%arg0: i32) -> i32 {
    %c0_i32 = arith.constant 0 : i32
    %c0_i32_0 = arith.constant 0 : i32
    return %c0_i32 : i32
  }
  func.func @transform_1(%arg0: i32) -> (i32, i32) {
    %c0_i32 = arith.constant 0 : i32
    %c0_i32_0 = arith.constant 0 : i32
    return %c0_i32, %arg0 : i32, i32
  }
  func.func @transform_2(%arg0: i32) -> (i32, i32) {
    %c0_i32 = arith.constant 0 : i32
    %c0_i32_0 = arith.constant 0 : i32
    return %c0_i32, %arg0 : i32, i32
  }
}

</mosaic_0001>

<llo_original>
// kernel: absolute_forward.1
$region0: #{absolute_forward.1}
  #allocation0 [shape = 'u32[]', space=smem, size = 0x4, offset = 0x4, fixed_abs, tag = 'smem constant byte address 0x4 - core index']
  #allocation1 [shape = 'u32[72,128]{1,0:T(1,128)}', space=vmem, size = 0x9000, scoped, tag = 'internal scratch']
  %s0 = inlined_call_operand.vmem [shape: f32[2], index: 0, kind: input, shape index: {}]
  %s1 = inlined_call_operand.vmem [shape: f32[1,1000], index: 1, kind: input, shape index: {}]
  %s2 = inlined_call_operand.hbm [shape: f32[1,1000], index: 2, kind: output, shape index: {}]
  %s3 = sld [smem:[#allocation0]]
  $region45: #{absolute_forward.1} parent=0
    _
  %s5 = ssub.s32 1, %s3
  %s6 = scalar_select 0, %s5, %s3
  $region1: #{absolute_forward.1} parent=0
    #allocation2 [shape = 'u8[512]{0}', space=smem, size = 0x200, scoped, tag = 'input window, operand 0, single buffered']
    #allocation3 [shape = 's32[2]{0}', space=sflag, size = 0x8, scoped, tag = 'scoped memory for absolute_forward.1']
    #allocation4 [shape = 's32[2]{0}', space=sflag, size = 0x8, scoped, tag = 'scoped memory for absolute_forward.1']
    #allocation5 [shape = 'u8[4096]{0}', space=vmem, size = 0x1000, scoped, tag = 'output window, operand 0']
    %7 = vsyncpa [#allocation4], 0
    %8 = vsyncpa [#allocation3], 0
    %s9 = scalar_lea.sflag [#allocation3], 1
    %10 = vsyncpa %s9, 0
    loop: start=0, step=1, limit=4
    $region2: #{absolute_forward.1} parent=1 // loop_pre_header
      _
    $region3: #{absolute_forward.1} parent=1 // loop_header
      %s12 = sphi 0, %s16
      %p13 = scmp.ge.s32.totalorder %s12, 4
      %s20 = sphi 0, %s20
      %s22 = sphi 0, %s20
      %s23 = sphi 0, %s22
      %s37 = sphi 0, %s23
      %s43 = sphi 0, %s45
      %s46 = sphi 0, %s43
      %s47 = sphi 0, %s46
      %s63 = sphi 0, %s47
      %s69 = sphi 0, %s71
      %s72 = sphi 0, %s69
      %s73 = sphi 0, %s72
      %s89 = sphi 0, %s73
    $region4: #{absolute_forward.1} parent=1 // loop_header_branch
      %15 = sbr.rel (%p13) target = $region8
    $region5: #{absolute_forward.1} parent=1 // loop_body
      %s17 = ssub.s32 %s12, 1
      %s18 = ssub.s32 %s12, 2
      %s19 = sadd.s32 %s12, 1
      %s21 = sadd.s32 %s20, 1
      %p24 = scmp.eq.s32.totalorder %s12, 1
      %p25 = scmp.ne.s32.totalorder %s20, %s22
      %p26 = scmp.eq.s32.totalorder %s12, 0
      %p27 = por %p25, %p26
      %p28 = scmp.ne.s32.totalorder %s20, %s22
      %p29 = scmp.eq.s32.totalorder %s17, 1
      %p30 = por %p28, %p29
      %p31 = scmp.ne.s32.totalorder %s22, %s23
      %p32 = scmp.eq.s32.totalorder %s17, 0
      %p33 = por %p31, %p32
      %p34 = scmp.ne.s32.totalorder %s22, %s23
      %p35 = scmp.eq.s32.totalorder %s18, 1
      %p36 = por %p34, %p35
      %p38 = scmp.ne.s32.totalorder %s23, %s37
      %p39 = scmp.eq.s32.totalorder %s18, 0
      %p40 = por %p38, %p39
      %s41 = ssub.s32 %s12, %s19
      %p42 = scmp.eq.s32.totalorder %s41, 0
      %s44 = sadd.s32 %s43, 1
      %s45 = scalar_select %p42, %s43, %s44
      %p48 = pneg %p42
      %p49 = scmp.eq.s32.totalorder %s12, 1
      %p50 = por %p48, %p49
      %p51 = scmp.ne.s32.totalorder %s43, %s46
      %p52 = scmp.eq.s32.totalorder %s12, 0
      %p53 = por %p51, %p52
      %p54 = scmp.ne.s32.totalorder %s43, %s46
      %p55 = scmp.eq.s32.totalorder %s17, 1
      %p56 = por %p54, %p55
      %p57 = scmp.ne.s32.totalorder %s46, %s47
      %p58 = scmp.eq.s32.totalorder %s17, 0
      %p59 = por %p57, %p58
      %p60 = scmp.ne.s32.totalorder %s46, %s47
      %p61 = scmp.eq.s32.totalorder %s18, 1
      %p62 = por %p60, %p61
      %p64 = scmp.ne.s32.totalorder %s47, %s63
      %p65 = scmp.eq.s32.totalorder %s18, 0
      %p66 = por %p64, %p65
      %s67 = ssub.s32 %s12, %s19
      %p68 = scmp.eq.s32.totalorder %s67, 0
      %s70 = sadd.s32 %s69, 1
      %s71 = scalar_select %p68, %s69, %s70
      %p74 = pneg %p68
      %p75 = scmp.eq.s32.totalorder %s12, 1
      %p76 = por %p74, %p75
      %p77 = scmp.ne.s32.totalorder %s69, %s72
      %p78 = scmp.eq.s32.totalorder %s12, 0
      %p79 = por %p77, %p78
      %p80 = scmp.ne.s32.totalorder %s69, %s72
      %p81 = scmp.eq.s32.totalorder %s17, 1
      %p82 = por %p80, %p81
      %p83 = scmp.ne.s32.totalorder %s72, %s73
      %p84 = scmp.eq.s32.totalorder %s17, 0
      %p85 = por %p83, %p84
      %p86 = scmp.ne.s32.totalorder %s72, %s73
      %p87 = scmp.eq.s32.totalorder %s18, 1
      %p88 = por %p86, %p87
      %p90 = scmp.ne.s32.totalorder %s73, %s89
      %p91 = scmp.eq.s32.totalorder %s18, 0
      %p92 = por %p90, %p91
      %p93 = scmp.le.s32.totalorder 1, %s12
      %p94 = scmp.lt.s32.totalorder %s12, 3
      %p95 = pnand %p93, %p94
      %p96 = pneg %p95
      // Predicated region
      $region9: #{absolute_forward.1} parent=5 // pred_check
        _
      $region10: #{absolute_forward.1} parent=5 // pred_check_branch
        %98 = sbr.rel (%p95) target = $region12
      $region11: #{absolute_forward.1} parent=5 // pred_region
        %s99 = ssub.s32 %s12, 1
        // Predicated region
        $region13: #{absolute_forward.1} parent=11 // pred_check
          %p100 = pneg %p33
        $region14: #{absolute_forward.1} parent=11 // pred_check_branch
          %102 = sbr.rel (%p100) target = $region16
        $region15: #{absolute_forward.1} parent=11 // pred_region
          %104 = vsyncadd [#allocation4], 0
          %s106 = sshll.u32 %s0, 4
          %s107 = int_to_ptr.vmem [resolvable:$true] %s106
          %109 = dma.vmem_to_smem %s107, 16, [#allocation2], [#allocation4]
        $region16: #{absolute_forward.1} parent=11 // pred_fallthru
          _
      $region12: #{absolute_forward.1} parent=5 // pred_fallthru
        _
      %p110 = scmp.lt.s32.totalorder %s12, 2
      // Predicated region
      $region17: #{absolute_forward.1} parent=5 // pred_check
        %p111 = pneg %p110
      $region18: #{absolute_forward.1} parent=5 // pred_check_branch
        %113 = sbr.rel (%p111) target = $region20
      $region19: #{absolute_forward.1} parent=5 // pred_region
        // Predicated region
        $region21: #{absolute_forward.1} parent=19 // pred_check
          %p114 = pneg %p53
        $region22: #{absolute_forward.1} parent=19 // pred_check_branch
          %116 = sbr.rel (%p114) target = $region24
        $region23: #{absolute_forward.1} parent=19 // pred_region
          %s117 = smul.u32 4, %s12
          %p118 = scmp.lt.s32.totalorder %s117, 7
          %s119 = scalar_select %p118, %s117, 7
          %s120 = scalar_lea.vmem %s1, %s119
          %s121 = smul.u32 4, %s12
        $region24: #{absolute_forward.1} parent=19 // pred_fallthru
          _
      $region20: #{absolute_forward.1} parent=5 // pred_fallthru
        _
      %p122 = scmp.le.s32.totalorder 1, %s12
      %p123 = scmp.lt.s32.totalorder %s12, 3
      %p124 = pnand %p122, %p123
      %p125 = pneg %p124
      // Predicated region
      $region25: #{absolute_forward.1} parent=5 // pred_check
        _
      $region26: #{absolute_forward.1} parent=5 // pred_check_branch
        %127 = sbr.rel (%p124) target = $region28
      $region27: #{absolute_forward.1} parent=5 // pred_region
        %s128 = ssub.s32 %s12, 1
        // Predicated region
        $region29: #{absolute_forward.1} parent=27 // pred_check
          %p129 = pneg %p33
        $region30: #{absolute_forward.1} parent=27 // pred_check_branch
          %131 = sbr.rel (%p129) target = $region32
        $region31: #{absolute_forward.1} parent=27 // pred_region
          %133 = dma.done [#allocation4], 16
        $region32: #{absolute_forward.1} parent=27 // pred_fallthru
          _
        %134 = sfence
        %p135 = pneg %p33
        %p136 = pneg %p30
        %s137 = smul.u32 4, %s17
        %p138 = scmp.lt.s32.totalorder %s137, 7
        %s139 = scalar_select %p138, %s137, 7
        %s140 = scalar_lea.vmem %s1, %s139
        %p141 = pneg %p59
        %p142 = pneg %p56
        %p143 = pneg %p85
        %p144 = pneg %p82
        %s145 = sand.u32 %s72, 1
        %s146 = scalar_lea.sflag [#allocation3], %s145
        %s147 = sand.u32 %s72, 1
        %s148 = smul.addr %s147, 4
        %s149 = scalar_lea.vmem [#allocation5], %s148
        %s150 = smul.u32 4, %s17
        %p151 = scmp.lt.s32.totalorder %s150, 7
        %s152 = scalar_select %p151, %s150, 7
        %s153 = scalar_lea.vmem %s1, %s152
        %s154 = smul.u32 4, %s17
        %s155 = smul.u32 4, %s17
        %s156 = sld [smem:[#allocation2]]
        %s157 = sld [smem:[#allocation2 + $0x1]]
        %v158 = vld [vmem:[%s153] sm:$0xf]
        %v159 = vstv %s156
        %v160 = vmul.f32 %v158, %v159
        %v161 = vstv %s157
        %v162 = vadd.f32 %v160, %v161
        %v163 = vlaneseq
        %vm164 = vcmp.ge.s32.totalorder %v163, 0
        %vm165 = vcmp.lt.s32.totalorder %v163, 512
        %vm166 = vmand %vm164, %vm165
        %167 = vst.msk [vmem:[%s149] sm:$0xf] %vm166, %v162
        %s168 = sand.u32 %s72, 1
        %s169 = scalar_lea.sflag [#allocation3], %s168
        %s170 = sand.u32 %s72, 1
        %s171 = smul.addr %s170, 4
        %s172 = scalar_lea.vmem [#allocation5], %s171
        // Predicated region
        $region33: #{absolute_forward.1} parent=27 // pred_check
          %p173 = pneg %p82
        $region34: #{absolute_forward.1} parent=27 // pred_check_branch
          %175 = sbr.rel (%p173) target = $region36
        $region35: #{absolute_forward.1} parent=27 // pred_region
          %s176 = smul.u32 4, %s17
          %178 = vsyncadd %s169, 0
          %s179 = scalar_lea.hbm %s2, %s176
          %s181 = sshll.u32 %s172, 4
          %s182 = int_to_ptr.vmem [resolvable:$true] %s181
          %s183 = sshll.u32 %s179, 4
          %s184 = int_to_ptr.hbm [resolvable:$true] %s183
          %186 = dma.vmem_to_hbm [thread:$0]  %s182, 64, %s184, %s169
        $region36: #{absolute_forward.1} parent=27 // pred_fallthru
          _
      $region28: #{absolute_forward.1} parent=5 // pred_fallthru
        _
      %p187 = scmp.le.s32.totalorder 2, %s12
      // Predicated region
      $region37: #{absolute_forward.1} parent=5 // pred_check
        %p188 = pneg %p187
      $region38: #{absolute_forward.1} parent=5 // pred_check_branch
        %190 = sbr.rel (%p188) target = $region40
      $region39: #{absolute_forward.1} parent=5 // pred_region
        %s191 = ssub.s32 %s12, 2
        // Predicated region
        $region41: #{absolute_forward.1} parent=39 // pred_check
          %p192 = pneg %p88
        $region42: #{absolute_forward.1} parent=39 // pred_check_branch
          %194 = sbr.rel (%p192) target = $region44
        $region43: #{absolute_forward.1} parent=39 // pred_region
          %s195 = sand.u32 %s73, 1
          %s196 = scalar_lea.sflag [#allocation3], %s195
          %s197 = sand.u32 %s73, 1
          %s198 = smul.addr %s197, 4
          %s199 = scalar_lea.vmem [#allocation5], %s198
          %201 = dma.done %s196, 64
        $region44: #{absolute_forward.1} parent=39 // pred_fallthru
          _
      $region40: #{absolute_forward.1} parent=5 // pred_fallthru
        _
    $region6: #{absolute_forward.1} parent=1 // loop_footer
      %s16 = sadd.s32 1, %s12
    $region7: #{absolute_forward.1} parent=1 // loop_footer_branch
      %11 = sbr.rel target = $region3
    $region8: #{absolute_forward.1} parent=1 // loop_exit
      _
    %202 = vsyncpa [#allocation3], 1
    %s203 = scalar_lea.sflag [#allocation3], 1
    %204 = vsyncpa %s203, 1
    %205 = vsyncpa [#allocation4], 1
    %s206 = scalar_lea.sflag [#allocation4], 1
    %207 = vsyncpa %s206, 1

</llo_original>
